<compile_context>
chip_gen: v5e
topology: v5e:2x2
jax: 0.10.0
libtpu: 0.0.40
codegen_flags: <defaults>
</compile_context>

<pallas_src>
import math
import jax
import jax.numpy as jnp
from jax.experimental import pallas as pl
from jax.experimental.pallas import tpu as pltpu

_LANE = 128


def _align_conv_kernel(x_ref, w_ref, b_ref, o_ref):
    """x_ref: (Bb, c_in, tn)  w_ref: (c_out, c_in)  b_ref: (c_out, 1)  o_ref: (Bb, c_out, tn)."""
    w = w_ref[...]
    b = b_ref[...]
    # Static unroll over the (small) batch block; each step is a lane-dense MXU matmul.
    # Compute is fully hidden under the HBM DMA, so keep the body simple (per review).
    for i in range(x_ref.shape[0]):
        acc = jnp.dot(
            w, x_ref[i],
            preferred_element_type=jnp.float32,
            precision=jax.lax.Precision.HIGHEST,  # f32-faithful; free on a mem-bound kernel
        )
        o_ref[i] = (acc + b).astype(o_ref.dtype)


def _vmem_budget_bytes():
    """Generation-aware scoped-VMEM budget with ~30% headroom for Mosaic scratch."""
    try:
        cap = pltpu.get_tpu_info().vmem_capacity_bytes  # 128 MiB v5e/v6e, 64 MiB per TC on v7x
    except Exception:
        cap = 64 << 20
    return int(max(32 << 20, min(int(cap * 0.7), 96 << 20)))


def _choose_blocks(B, c_in, c_out, N, itemsize, vmem_budget):
    """Pick (batch_block, tile_n) for the memory-bound 1x1 conv."""
    # Double-buffered x + out blocks, per batch row, per lane (resident w/b is negligible).
    per_lane_bytes = 2 * (c_in + c_out) * itemsize
    max_lanes = max(_LANE, vmem_budget // per_lane_bytes)

    # --- spatial tile: full N when it fits, otherwise an even 128-multiple split -------------
    if N <= max_lanes:
        tile_n = N  # one contiguous DMA per batch row
    else:
        n_groups = pl.cdiv(N, _LANE)
        n_steps = pl.cdiv(n_groups, max(1, max_lanes // _LANE))
        tile_n = _LANE * pl.cdiv(n_groups, n_steps)  # even split -> no near-empty tail block

    # --- batch block: amortize per-step overhead when the spatial axis is small --------------
    target_lanes = 4096
    if tile_n == N:
        lanes_per_row = _LANE * pl.cdiv(N, _LANE)
        bb_cap = min(B,
                     max(1, max_lanes // lanes_per_row),
                     max(1, target_lanes // lanes_per_row))
        bb = max(d for d in range(1, bb_cap + 1) if B % d == 0)  # divisor of B -> exact grid
    else:
        bb = 1

    # --- ensure >= 2 grid steps so both v7x TensorCores get work ------------------------------
    # (on 1-TC v5e/v6e this costs one extra ~0.35us pipeline step -> negligible)
    if (B // bb) * pl.cdiv(N, tile_n) < 2:
        if B >= 2:
            bb = max(d for d in range(1, B // 2 + 1) if B % d == 0)
        elif N >= 2 * _LANE:
            tile_n = _LANE * pl.cdiv(pl.cdiv(N, _LANE), 2)

    return bb, tile_n


def conv1x1_nchw(x3d, w, b, *, block_b=None, tile_n=None):
    """1x1 conv in channels-first layout.

    x3d: (B, c_in, N), w: (c_out, c_in), b: (c_out, 1) -> (B, c_out, N).
    """
    B, c_in, N = x3d.shape
    c_out = w.shape[0]
    itemsize = jnp.dtype(x3d.dtype).itemsize
    vmem_budget = _vmem_budget_bytes()

    auto_bb, auto_tn = _choose_blocks(B, c_in, c_out, N, itemsize, vmem_budget)
    bb = auto_bb if block_b is None else block_b
    tn = auto_tn if tile_n is None else tile_n

    assert B % bb == 0, (B, bb)
    # Last block dim must be a multiple of 128 or the full array dim.
    assert tn == N or tn % _LANE == 0, (tn, N)

    grid = (B // bb, pl.cdiv(N, tn))

    block_bytes = 2 * bb * (c_in + c_out) * tn * itemsize          # double-buffered x + out
    resident_bytes = 2 * (c_out * c_in + c_out) * itemsize          # weight + bias
    vmem_limit = int(min(max(block_bytes + resident_bytes + (4 << 20), 8 << 20), vmem_budget))

    return pl.pallas_call(
        _align_conv_kernel,
        out_shape=jax.ShapeDtypeStruct((B, c_out, N), x3d.dtype),
        grid_spec=pltpu.PrefetchScalarGridSpec(
            num_scalar_prefetch=0,
            grid=grid,
            in_specs=[
                pl.BlockSpec((bb, c_in, tn), lambda bi, j: (bi, 0, j)),
                pl.BlockSpec((c_out, c_in), lambda bi, j: (0, 0)),  # resident in VMEM
                pl.BlockSpec((c_out, 1), lambda bi, j: (0, 0)),     # resident in VMEM
            ],
            out_specs=pl.BlockSpec((bb, c_out, tn), lambda bi, j: (bi, 0, j)),
        ),
        compiler_params=pltpu.CompilerParams(
            dimension_semantics=("parallel", "parallel"),
            vmem_limit_bytes=vmem_limit,
        ),
    )(x3d, w, b)


def align_forward(x, weight, bias, c_in, c_out, *, block_b=None, tile_n=None):
    """Align.forward.  x: (B, c_in, T, V) NCHW.  weight: (c_out, c_in, 1, 1), bias: (c_out,)."""
    if c_in > c_out:
        B, C, T, V = x.shape
        x3d = x.reshape(B, C, T * V)                # free reshape (contiguous trailing dims)
        w = weight.reshape(c_out, c_in).astype(x.dtype)
        b = bias.reshape(c_out, 1).astype(x.dtype)  # broadcast over lanes inside the kernel
        y = conv1x1_nchw(x3d, w, b, block_b=block_b, tile_n=tile_n)  # (B, c_out, T*V)
        return y.reshape(B, c_out, T, V)
    elif c_in < c_out:
        # Channel zero-pad; single fused write, no explicit zeros tensor + concat copy.
        return jnp.pad(x, ((0, 0), (0, c_out - c_in), (0, 0), (0, 0)))
    else:
        return x


def init_align_params(key, c_in, c_out):
    """Conv2d(c_in, c_out, (1,1)) init matching PyTorch defaults (kaiming_uniform a=sqrt(5))."""
    kw, kb = jax.random.split(key)
    fan_in = c_in  # 1x1 kernel
    w_bound = 1.0 / math.sqrt(fan_in)
    b_bound = 1.0 / math.sqrt(fan_in)
    weight = jax.random.uniform(kw, (c_out, c_in, 1, 1), jnp.float32, -w_bound, w_bound)
    bias = jax.random.uniform(kb, (c_out,), jnp.float32, -b_bound, b_bound)
    return weight, bias


if __name__ == "__main__":
    key = jax.random.PRNGKey(0)
    k_x, k_p, k_x2 = jax.random.split(key, 3)

    # Case 1: c_in > c_out -> Pallas 1x1-conv path, auto tiling.  N = T*V = 128.
    B, C_IN, C_OUT, T, V = 2, 8, 4, 8, 16
    x = jax.random.normal(k_x, (B, C_IN, T, V), jnp.float32)
    weight, bias = init_align_params(k_p, C_IN, C_OUT)

    y = jax.block_until_ready(align_forward(x, weight, bias, C_IN, C_OUT))
    assert y.shape == (B, C_OUT, T, V), y.shape
    y_ref = (jnp.einsum("bctv,oc->botv", x, weight.reshape(C_OUT, C_IN))
             + bias[None, :, None, None])
    assert jnp.allclose(y, y_ref, atol=1e-5, rtol=1e-5)

    # Case 2: N = 200 (not a multiple of 128), forced tile_n=128 + batch block of 2 ->
    # exercises batch-blocking and the masked tail block on the lane axis.
    T2, V2 = 10, 20
    x2 = jax.random.normal(k_x2, (B, C_IN, T2, V2), jnp.float32)
    y2 = jax.block_until_ready(
        align_forward(x2, weight, bias, C_IN, C_OUT, block_b=2, tile_n=128))
    y2_ref = (jnp.einsum("bctv,oc->botv", x2, weight.reshape(C_OUT, C_IN))
              + bias[None, :, None, None])
    assert y2.shape == (B, C_OUT, T2, V2), y2.shape
    assert jnp.allclose(y2, y2_ref, atol=1e-5, rtol=1e-5)

    # Case 3: bf16 traffic (near-2x fewer HBM bytes); accumulate stays f32 in-kernel.
    xb = x.astype(jnp.bfloat16)
    yb = jax.block_until_ready(
        align_forward(xb, weight.astype(jnp.bfloat16), bias.astype(jnp.bfloat16), C_IN, C_OUT))
    yb_ref = (jnp.einsum("bctv,oc->botv",
                         xb.astype(jnp.float32),
                         weight.reshape(C_OUT, C_IN).astype(jnp.bfloat16).astype(jnp.float32))
              + bias.astype(jnp.bfloat16).astype(jnp.float32)[None, :, None, None])
    assert yb.dtype == jnp.bfloat16 and yb.shape == (B, C_OUT, T, V)
    assert jnp.allclose(yb.astype(jnp.float32), yb_ref, atol=5e-2, rtol=5e-2)

    # Case 4: c_in < c_out -> zero-pad path (plain XLA, no kernel needed).
    y_pad = jax.block_until_ready(align_forward(x, None, None, C_IN, C_IN + 4))
    assert y_pad.shape == (B, C_IN + 4, T, V)
    assert jnp.allclose(y_pad[:, :C_IN], x) and jnp.all(y_pad[:, C_IN:] == 0)

    # Case 5: c_in == c_out -> identity.
    y_id = jax.block_until_ready(align_forward(x, None, None, C_IN, C_IN))
    assert y_id.shape == x.shape
    assert jnp.allclose(y_id, x)

    print("KERNEL_OK")
</pallas_src>

<mosaic_0001>
module attributes {stable_mosaic.version = 11 : i64} {
  func.func @_align_conv_kernel(%arg0: i32, %arg1: i32, %arg2: memref<1x8x128xf32, #tpu.memory_space<vmem>>, %arg3: memref<4x8xf32, #tpu.memory_space<vmem>>, %arg4: memref<4x1xf32, #tpu.memory_space<vmem>>, %arg5: memref<1x4x128xf32, #tpu.memory_space<vmem>>) attributes {dimension_semantics = [#tpu.dimension_semantics<parallel>, #tpu.dimension_semantics<parallel>], iteration_bounds = array<i64: 2, 1>, scalar_prefetch = 0 : i64, scratch_operands = 0 : i64, tpu.core_type = #tpu.core_type<tc>, window_params = [{transform_indices = @transform_0, window_bounds = array<i64: 1, 8, 128>}, {pipeline_mode = #tpu.pipeline_mode<synchronous>, transform_indices = @transform_1, window_bounds = array<i64: 4, 8>}, {pipeline_mode = #tpu.pipeline_mode<synchronous>, transform_indices = @transform_2, window_bounds = array<i64: 4, 1>}, {transform_indices = @transform_3, window_bounds = array<i64: 1, 4, 128>}]} {
    %c0 = arith.constant 0 : index
    %c0_0 = arith.constant 0 : index
    %0 = vector.load %arg3[%c0, %c0_0] : memref<4x8xf32, #tpu.memory_space<vmem>>, vector<4x8xf32>
    %c0_1 = arith.constant 0 : index
    %c0_2 = arith.constant 0 : index
    %1 = vector.load %arg4[%c0_1, %c0_2] : memref<4x1xf32, #tpu.memory_space<vmem>>, vector<4x1xf32>
    %c0_3 = arith.constant 0 : index
    %c0_4 = arith.constant 0 : index
    %c0_5 = arith.constant 0 : index
    %2 = vector.load %arg2[%c0_3, %c0_4, %c0_5] : memref<1x8x128xf32, #tpu.memory_space<vmem>>, vector<1x8x128xf32>
    %3 = vector.shape_cast %2 : vector<1x8x128xf32> to vector<8x128xf32>
    %cst = arith.constant dense<0.000000e+00> : vector<4x128xf32>
    %4 = tpu.matmul %0, %3, %cst {dimension_numbers = #tpu.dot_dimension_numbers<[1], [0], [0], [1], [0, 0, 1, 1], [], []>, precision = #tpu.contract_precision<fp32>} : vector<4x8xf32>, vector<8x128xf32>, vector<4x128xf32> -> vector<4x128xf32>
    %5 = vector.broadcast %1 : vector<4x1xf32> to vector<4x128xf32>
    %6 = arith.addf %4, %5 : vector<4x128xf32>
    %c0_6 = arith.constant 0 : index
    %c0_7 = arith.constant 0 : index
    %c0_8 = arith.constant 0 : index
    %7 = vector.load %arg5[%c0_6, %c0_7, %c0_8] : memref<1x4x128xf32, #tpu.memory_space<vmem>>, vector<1x4x128xf32>
    %8 = vector.shape_cast %7 : vector<1x4x128xf32> to vector<4x128xf32>
    %9 = vector.shape_cast %6 : vector<4x128xf32> to vector<1x4x128xf32>
    tpu.vector_store %arg5[%c0_6, %c0_7, %c0_8], %9 {strides = array<i32>} : memref<1x4x128xf32, #tpu.memory_space<vmem>>, vector<1x4x128xf32>,
    return
  }
  func.func @transform_0(%arg0: i32, %arg1: i32) -> (i32, i32, i32) {
    %c0_i32 = arith.constant 0 : i32
    %c0_i32_0 = arith.constant 0 : i32
    return %arg0, %c0_i32, %arg1 : i32, i32, i32
  }
  func.func @transform_1(%arg0: i32, %arg1: i32) -> (i32, i32) {
    %c0_i32 = arith.constant 0 : i32
    %c0_i32_0 = arith.constant 0 : i32
    %c0_i32_1 = arith.constant 0 : i32
    return %c0_i32, %c0_i32_0 : i32, i32
  }
  func.func @transform_2(%arg0: i32, %arg1: i32) -> (i32, i32) {
    %c0_i32 = arith.constant 0 : i32
    %c0_i32_0 = arith.constant 0 : i32
    %c0_i32_1 = arith.constant 0 : i32
    return %c0_i32, %c0_i32_0 : i32, i32
  }
  func.func @transform_3(%arg0: i32, %arg1: i32) -> (i32, i32, i32) {
    %c0_i32 = arith.constant 0 : i32
    %c0_i32_0 = arith.constant 0 : i32
    return %arg0, %c0_i32, %arg1 : i32, i32, i32
  }
}

</mosaic_0001>

<llo_original>
// kernel: tpu_custom_call.1
$region0: #{tpu_custom_call.1}
  #allocation0 [shape = 'u32[]', space=smem, size = 0x4, offset = 0x4, fixed_abs, tag = 'smem constant byte address 0x4 - core index']
  #allocation1 [shape = 'u32[72,128]{1,0:T(1,128)}', space=vmem, size = 0x9000, scoped, tag = 'internal scratch']
  %s0 = inlined_call_operand.hbm [shape: f32[2,8,128], index: 0, kind: input, shape index: {}]
  %s1 = inlined_call_operand.vmem [shape: f32[4,8], index: 1, kind: input, shape index: {}]
  %s2 = inlined_call_operand.vmem [shape: f32[4,1], index: 2, kind: input, shape index: {}]
  %s3 = inlined_call_operand.hbm [shape: f32[2,4,128], index: 3, kind: output, shape index: {}]
  %s4 = sld [smem:[#allocation0]]
  $region49: #{tpu_custom_call.1} parent=0
    _
  %s6 = ssub.s32 1, %s4
  %s7 = scalar_select 0, %s6, %s4
  $region1: #{tpu_custom_call.1} parent=0
    #allocation2 [shape = 'u8[8192]{0}', space=vmem, size = 0x2000, scoped, tag = 'input window, operand 0']
    #allocation3 [shape = 's32[2]{0}', space=sflag, size = 0x8, scoped, tag = 'scoped memory for tpu_custom_call.1']
    #allocation4 [shape = 's32[2]{0}', space=sflag, size = 0x8, scoped, tag = 'scoped memory for tpu_custom_call.1']
    #allocation5 [shape = 'u8[4096]{0}', space=vmem, size = 0x1000, scoped, tag = 'output window, operand 0']
    %8 = vsyncpa [#allocation3], 0
    %s9 = scalar_lea.sflag [#allocation3], 1
    %10 = vsyncpa %s9, 0
    %11 = vsyncpa [#allocation4], 0
    %s12 = scalar_lea.sflag [#allocation4], 1
    %13 = vsyncpa %s12, 0
    loop: start=0, step=1, limit=4
    $region2: #{tpu_custom_call.1} parent=1 // loop_pre_header
      _
    $region3: #{tpu_custom_call.1} parent=1 // loop_header
      %s15 = sphi 0, %s19
      %p16 = scmp.ge.s32.totalorder %s15, 4
      %s22 = sphi 0, %s34
      %s23 = sphi 0, %s30
      %s24 = sphi 0, %s22
      %s25 = sphi 0, %s23
      %s26 = sphi 0, %s24
      %s27 = sphi 0, %s25
      %s39 = sphi 0, %s41
      %s42 = sphi 0, %s39
      %s43 = sphi 0, %s42
      %s59 = sphi 0, %s43
      %s63 = sphi 0, %s63
      %s65 = sphi 0, %s63
      %s66 = sphi 0, %s65
      %s80 = sphi 0, %s66
      %s84 = sphi 0, %s84
      %s86 = sphi 0, %s84
      %s87 = sphi 0, %s86
      %s101 = sphi 0, %s87
      %s109 = sphi 0, %s111
      %s112 = sphi 0, %s109
      %s113 = sphi 0, %s112
      %s129 = sphi 0, %s113
    $region4: #{tpu_custom_call.1} parent=1 // loop_header_branch
      %18 = sbr.rel (%p16) target = $region8
    $region5: #{tpu_custom_call.1} parent=1 // loop_body
      %s20 = ssub.s32 %s15, 1
      %s21 = ssub.s32 %s15, 2
      %s28 = sadd.s32 1, %s23
      %p29 = scmp.ge.s32.totalorder %s28, 1
      %s30 = scalar_select %p29, 0, %s28
      %s31 = sadd.s32 1, %s22
      %s32 = scalar_select %p29, %s31, %s22
      %p33 = scmp.ge.s32.totalorder %s32, 2
      %s34 = scalar_select %p33, 0, %s32
      %s35 = ssub.s32 %s22, %s34
      %s36 = ssub.s32 %s23, %s30
      %s37 = sor.u32 %s35, %s36
      %p38 = scmp.eq.s32.totalorder %s37, 0
      %s40 = sadd.s32 %s39, 1
      %s41 = scalar_select %p38, %s39, %s40
      %p44 = pneg %p38
      %p45 = scmp.eq.s32.totalorder %s15, 1
      %p46 = por %p44, %p45
      %p47 = scmp.ne.s32.totalorder %s39, %s42
      %p48 = scmp.eq.s32.totalorder %s15, 0
      %p49 = por %p47, %p48
      %p50 = scmp.ne.s32.totalorder %s39, %s42
      %p51 = scmp.eq.s32.totalorder %s20, 1
      %p52 = por %p50, %p51
      %p53 = scmp.ne.s32.totalorder %s42, %s43
      %p54 = scmp.eq.s32.totalorder %s20, 0
      %p55 = por %p53, %p54
      %p56 = scmp.ne.s32.totalorder %s42, %s43
      %p57 = scmp.eq.s32.totalorder %s21, 1
      %p58 = por %p56, %p57
      %p60 = scmp.ne.s32.totalorder %s43, %s59
      %p61 = scmp.eq.s32.totalorder %s21, 0
      %p62 = por %p60, %p61
      %s64 = sadd.s32 %s63, 1
      %p67 = scmp.eq.s32.totalorder %s15, 1
      %p68 = scmp.ne.s32.totalorder %s63, %s65
      %p69 = scmp.eq.s32.totalorder %s15, 0
      %p70 = por %p68, %p69
      %p71 = scmp.ne.s32.totalorder %s63, %s65
      %p72 = scmp.eq.s32.totalorder %s20, 1
      %p73 = por %p71, %p72
      %p74 = scmp.ne.s32.totalorder %s65, %s66
      %p75 = scmp.eq.s32.totalorder %s20, 0
      %p76 = por %p74, %p75
      %p77 = scmp.ne.s32.totalorder %s65, %s66
      %p78 = scmp.eq.s32.totalorder %s21, 1
      %p79 = por %p77, %p78
      %p81 = scmp.ne.s32.totalorder %s66, %s80
      %p82 = scmp.eq.s32.totalorder %s21, 0
      %p83 = por %p81, %p82
      %s85 = sadd.s32 %s84, 1
      %p88 = scmp.eq.s32.totalorder %s15, 1
      %p89 = scmp.ne.s32.totalorder %s84, %s86
      %p90 = scmp.eq.s32.totalorder %s15, 0
      %p91 = por %p89, %p90
      %p92 = scmp.ne.s32.totalorder %s84, %s86
      %p93 = scmp.eq.s32.totalorder %s20, 1
      %p94 = por %p92, %p93
      %p95 = scmp.ne.s32.totalorder %s86, %s87
      %p96 = scmp.eq.s32.totalorder %s20, 0
      %p97 = por %p95, %p96
      %p98 = scmp.ne.s32.totalorder %s86, %s87
      %p99 = scmp.eq.s32.totalorder %s21, 1
      %p100 = por %p98, %p99
      %p102 = scmp.ne.s32.totalorder %s87, %s101
      %p103 = scmp.eq.s32.totalorder %s21, 0
      %p104 = por %p102, %p103
      %s105 = ssub.s32 %s22, %s34
      %s106 = ssub.s32 %s23, %s30
      %s107 = sor.u32 %s105, %s106
      %p108 = scmp.eq.s32.totalorder %s107, 0
      %s110 = sadd.s32 %s109, 1
      %s111 = scalar_select %p108, %s109, %s110
      %p114 = pneg %p108
      %p115 = scmp.eq.s32.totalorder %s15, 1
      %p116 = por %p114, %p115
      %p117 = scmp.ne.s32.totalorder %s109, %s112
      %p118 = scmp.eq.s32.totalorder %s15, 0
      %p119 = por %p117, %p118
      %p120 = scmp.ne.s32.totalorder %s109, %s112
      %p121 = scmp.eq.s32.totalorder %s20, 1
      %p122 = por %p120, %p121
      %p123 = scmp.ne.s32.totalorder %s112, %s113
      %p124 = scmp.eq.s32.totalorder %s20, 0
      %p125 = por %p123, %p124
      %p126 = scmp.ne.s32.totalorder %s112, %s113
      %p127 = scmp.eq.s32.totalorder %s21, 1
      %p128 = por %p126, %p127
      %p130 = scmp.ne.s32.totalorder %s113, %s129
      %p131 = scmp.eq.s32.totalorder %s21, 0
      %p132 = por %p130, %p131
      %p133 = scmp.le.s32.totalorder 1, %s15
      %p134 = scmp.lt.s32.totalorder %s15, 3
      %p135 = pnand %p133, %p134
      %p136 = pneg %p135
      // Predicated region
      $region9: #{tpu_custom_call.1} parent=5 // pred_check
        _
      $region10: #{tpu_custom_call.1} parent=5 // pred_check_branch
        %138 = sbr.rel (%p135) target = $region12
      $region11: #{tpu_custom_call.1} parent=5 // pred_region
        %s139 = ssub.s32 %s15, 1
        // Predicated region
        $region13: #{tpu_custom_call.1} parent=11 // pred_check
          %p140 = pneg %p76
        $region14: #{tpu_custom_call.1} parent=11 // pred_check_branch
          %142 = sbr.rel (%p140) target = $region16
        $region15: #{tpu_custom_call.1} parent=11 // pred_region
          _
        $region16: #{tpu_custom_call.1} parent=11 // pred_fallthru
          _
        // Predicated region
        $region17: #{tpu_custom_call.1} parent=11 // pred_check
          %p143 = pneg %p97
        $region18: #{tpu_custom_call.1} parent=11 // pred_check_branch
          %145 = sbr.rel (%p143) target = $region20
        $region19: #{tpu_custom_call.1} parent=11 // pred_region
          _
        $region20: #{tpu_custom_call.1} parent=11 // pred_fallthru
          _
      $region12: #{tpu_custom_call.1} parent=5 // pred_fallthru
        _
      %p146 = scmp.lt.s32.totalorder %s15, 2
      // Predicated region
      $region21: #{tpu_custom_call.1} parent=5 // pred_check
        %p147 = pneg %p146
      $region22: #{tpu_custom_call.1} parent=5 // pred_check_branch
        %149 = sbr.rel (%p147) target = $region24
      $region23: #{tpu_custom_call.1} parent=5 // pred_region
        // Predicated region
        $region25: #{tpu_custom_call.1} parent=23 // pred_check
          %p150 = pneg %p49
        $region26: #{tpu_custom_call.1} parent=23 // pred_check_branch
          %152 = sbr.rel (%p150) target = $region28
        $region27: #{tpu_custom_call.1} parent=23 // pred_region
          %s153 = sand.u32 %s39, 1
          %s154 = scalar_lea.sflag [#allocation3], %s153
          %s155 = sand.u32 %s39, 1
          %s156 = smul.addr %s155, 8
          %s157 = scalar_lea.vmem [#allocation2], %s156
          %159 = vsyncadd %s154, 0
          %s160 = sadd.s32 %s23, %s22
          %s161 = smul.addr %s160, 8
          %s162 = scalar_lea.hbm %s0, %s161
          %s164 = sshll.u32 %s162, 4
          %s165 = int_to_ptr.hbm [resolvable:$true] %s164
          %s166 = sshll.u32 %s157, 4
          %s167 = int_to_ptr.vmem [resolvable:$true] %s166
          %169 = dma.hbm_to_vmem [thread:$0]  %s165, 128, %s167, %s154
        $region28: #{tpu_custom_call.1} parent=23 // pred_fallthru
          _
      $region24: #{tpu_custom_call.1} parent=5 // pred_fallthru
        _
      %p170 = scmp.le.s32.totalorder 1, %s15
      %p171 = scmp.lt.s32.totalorder %s15, 3
      %p172 = pnand %p170, %p171
      %p173 = pneg %p172
      // Predicated region
      $region29: #{tpu_custom_call.1} parent=5 // pred_check
        _
      $region30: #{tpu_custom_call.1} parent=5 // pred_check_branch
        %175 = sbr.rel (%p172) target = $region32
      $region31: #{tpu_custom_call.1} parent=5 // pred_region
        %s176 = ssub.s32 %s15, 1
        %s177 = sand.u32 %s42, 1
        %s178 = scalar_lea.sflag [#allocation3], %s177
        %s179 = sand.u32 %s42, 1
        %s180 = smul.addr %s179, 8
        %s181 = scalar_lea.vmem [#allocation2], %s180
        // Predicated region
        $region33: #{tpu_custom_call.1} parent=31 // pred_check
          %p182 = pneg %p55
        $region34: #{tpu_custom_call.1} parent=31 // pred_check_branch
          %184 = sbr.rel (%p182) target = $region36
        $region35: #{tpu_custom_call.1} parent=31 // pred_region
          %186 = dma.done %s178, 128
        $region36: #{tpu_custom_call.1} parent=31 // pred_fallthru
          _
        %s187 = sand.u32 %s42, 1
        %s188 = scalar_lea.sflag [#allocation3], %s187
        %s189 = sand.u32 %s42, 1
        %s190 = smul.addr %s189, 8
        %s191 = scalar_lea.vmem [#allocation2], %s190
        %p192 = pneg %p55
        %p193 = pneg %p52
        %p194 = pneg %p76
        %p195 = pneg %p73
        %p196 = pneg %p97
        %p197 = pneg %p94
        %p198 = pneg %p125
        %p199 = pneg %p122
        %s200 = sand.u32 %s112, 1
        %s201 = scalar_lea.sflag [#allocation4], %s200
        %s202 = sand.u32 %s112, 1
        %s203 = smul.addr %s202, 4
        %s204 = scalar_lea.vmem [#allocation5], %s203
        %v205 = vld [vmem:[%s1] sm:$0xf]
        %v206 = vld [vmem:[%s2] sm:$0xf]
        %v207 = vld [vmem:[%s181] sm:$0xff]
        %209 = vset.pattern.permute.xlu0 0
        %210 = vperm.xlu0 %209, %v206
        %v211 = vpop.permute.xlu0 %210
        %vm213 = vcmask 64512
        %v215 = vsel %vm213, %v205, 0
        %217 = vmatpush.msra.mxu0 0.0
        %218 = vmatpush.msra.mxu0 0.0
        %219 = vmatpush.msra.mxu0 0.0
        %220 = vmatpush.msra.mxu0 0.0
        %221 = vmatpush.msra.mxu0 0.0
        %222 = vmatpush.msra.mxu0 0.0
        %223 = vmatpush.msra.mxu0 0.0
        %224 = vmatpush.msra.mxu0 0.0
        %225 = vmatpush.msra.mxu0 0.0
        %226 = vmatpush.msra.mxu0 0.0
        %227 = vmatpush.msra.mxu0 0.0
        %228 = vmatpush.msra.mxu0 0.0
        %229 = vmatpush.msra.mxu0 0.0
        %230 = vmatpush.msra.mxu0 0.0
        %231 = vmatpush.msra.mxu0 0.0
        %v232 = vand.u32 %v207, 4294901760
        %233 = vmatpush.msra.mxu0 %v232
        %v234 = vand.u32 %v215, 4294901760
        %v235 = vsub.f32 %v215, %v234
        %v236 = vand.u32 %v235, 4294901760
        %v237 = vsub.f32 %v235, %v236
        %v238 = vand.u32 %v237, 4294901760
        %239 = vmatmul.f32.gmra.mxu0 %v238
        %v240 = vpop.f32.mrf.mxu0
        %v241 = vadd.f32 %v211, %v240
        %242 = vdwg.mxu0
        %243 = vmatpush.msra.mxu0 0.0
        %244 = vmatpush.msra.mxu0 0.0
        %245 = vmatpush.msra.mxu0 0.0
        %246 = vmatpush.msra.mxu0 0.0
        %247 = vmatpush.msra.mxu0 0.0
        %248 = vmatpush.msra.mxu0 0.0
        %249 = vmatpush.msra.mxu0 0.0
        %250 = vmatpush.msra.mxu0 0.0
        %251 = vmatpush.msra.mxu0 0.0
        %252 = vmatpush.msra.mxu0 0.0
        %253 = vmatpush.msra.mxu0 0.0
        %254 = vmatpush.msra.mxu0 0.0
        %255 = vmatpush.msra.mxu0 0.0
        %256 = vmatpush.msra.mxu0 0.0
        %257 = vmatpush.msra.mxu0 0.0
        %v258 = vand.u32 %v207, 4294901760
        %v259 = vsub.f32 %v207, %v258
        %v260 = vand.u32 %v259, 4294901760
        %v261 = vsub.f32 %v259, %v260
        %v262 = vand.u32 %v261, 4294901760
        %263 = vmatpush.msra.mxu0 %v262
        %v264 = vand.u32 %v215, 4294901760
        %265 = vmatmul.f32.gmra.mxu0 %v264
        %v266 = vpop.f32.mrf.mxu0
        %v267 = vadd.f32 %v241, %v266
        %268 = vdwg.mxu0
        %269 = vmatpush.msra.mxu0 0.0
        %270 = vmatpush.msra.mxu0 0.0
        %271 = vmatpush.msra.mxu0 0.0
        %272 = vmatpush.msra.mxu0 0.0
        %273 = vmatpush.msra.mxu0 0.0
        %274 = vmatpush.msra.mxu0 0.0
        %275 = vmatpush.msra.mxu0 0.0
        %276 = vmatpush.msra.mxu0 0.0
        %277 = vmatpush.msra.mxu0 0.0
        %278 = vmatpush.msra.mxu0 0.0
        %279 = vmatpush.msra.mxu0 0.0
        %280 = vmatpush.msra.mxu0 0.0
        %281 = vmatpush.msra.mxu0 0.0
        %282 = vmatpush.msra.mxu0 0.0
        %283 = vmatpush.msra.mxu0 0.0
        %v284 = vand.u32 %v207, 4294901760
        %v285 = vsub.f32 %v207, %v284
        %286 = vmatpush.msra.mxu0 %v285
        %v287 = vand.u32 %v215, 4294901760
        %v288 = vsub.f32 %v215, %v287
        %289 = vmatmul.f32.gmra.mxu0 %v288
        %v290 = vpop.f32.mrf.mxu0
        %v291 = vadd.f32 %v267, %v290
        %292 = vdwg.mxu0
        %293 = vmatpush.msra.mxu0 0.0
        %294 = vmatpush.msra.mxu0 0.0
        %295 = vmatpush.msra.mxu0 0.0
        %296 = vmatpush.msra.mxu0 0.0
        %297 = vmatpush.msra.mxu0 0.0
        %298 = vmatpush.msra.mxu0 0.0
        %299 = vmatpush.msra.mxu0 0.0
        %300 = vmatpush.msra.mxu0 0.0
        %301 = vmatpush.msra.mxu0 0.0
        %302 = vmatpush.msra.mxu0 0.0
        %303 = vmatpush.msra.mxu0 0.0
        %304 = vmatpush.msra.mxu0 0.0
        %305 = vmatpush.msra.mxu0 0.0
        %306 = vmatpush.msra.mxu0 0.0
        %307 = vmatpush.msra.mxu0 0.0
        %v308 = vand.u32 %v207, 4294901760
        %309 = vmatpush.msra.mxu0 %v308
        %v310 = vand.u32 %v215, 4294901760
        %v311 = vsub.f32 %v215, %v310
        %v312 = vand.u32 %v311, 4294901760
        %313 = vmatmul.f32.gmra.mxu0 %v312
        %v314 = vpop.f32.mrf.mxu0
        %v315 = vadd.f32 %v291, %v314
        %316 = vdwg.mxu0
        %317 = vmatpush.msra.mxu0 0.0
        %318 = vmatpush.msra.mxu0 0.0
        %319 = vmatpush.msra.mxu0 0.0
        %320 = vmatpush.msra.mxu0 0.0
        %321 = vmatpush.msra.mxu0 0.0
        %322 = vmatpush.msra.mxu0 0.0
        %323 = vmatpush.msra.mxu0 0.0
        %324 = vmatpush.msra.mxu0 0.0
        %325 = vmatpush.msra.mxu0 0.0
        %326 = vmatpush.msra.mxu0 0.0
        %327 = vmatpush.msra.mxu0 0.0
        %328 = vmatpush.msra.mxu0 0.0
        %329 = vmatpush.msra.mxu0 0.0
        %330 = vmatpush.msra.mxu0 0.0
        %331 = vmatpush.msra.mxu0 0.0
        %v332 = vand.u32 %v207, 4294901760
        %v333 = vsub.f32 %v207, %v332
        %v334 = vand.u32 %v333, 4294901760
        %335 = vmatpush.msra.mxu0 %v334
        %v336 = vand.u32 %v215, 4294901760
        %337 = vmatmul.f32.gmra.mxu0 %v336
        %v338 = vpop.f32.mrf.mxu0
        %v339 = vadd.f32 %v315, %v338
        %340 = vdwg.mxu0
        %341 = vmatpush.msra.mxu0 0.0
        %342 = vmatpush.msra.mxu0 0.0
        %343 = vmatpush.msra.mxu0 0.0
        %344 = vmatpush.msra.mxu0 0.0
        %345 = vmatpush.msra.mxu0 0.0
        %346 = vmatpush.msra.mxu0 0.0
        %347 = vmatpush.msra.mxu0 0.0
        %348 = vmatpush.msra.mxu0 0.0
        %349 = vmatpush.msra.mxu0 0.0
        %350 = vmatpush.msra.mxu0 0.0
        %351 = vmatpush.msra.mxu0 0.0
        %352 = vmatpush.msra.mxu0 0.0
        %353 = vmatpush.msra.mxu0 0.0
        %354 = vmatpush.msra.mxu0 0.0
        %355 = vmatpush.msra.mxu0 0.0
        %v356 = vand.u32 %v207, 4294901760
        %357 = vmatpush.msra.mxu0 %v356
        %v358 = vand.u32 %v215, 4294901760
        %359 = vmatmul.f32.gmra.mxu0 %v358
        %v360 = vpop.f32.mrf.mxu0
        %v361 = vadd.f32 %v339, %v360
        %362 = vdwg.mxu0
        %363 = vst [vmem:[%s204] sm:$0xf] %v361
        %s364 = sand.u32 %s112, 1
        %s365 = scalar_lea.sflag [#allocation4], %s364
        %s366 = sand.u32 %s112, 1
        %s367 = smul.addr %s366, 4
        %s368 = scalar_lea.vmem [#allocation5], %s367
        // Predicated region
        $region37: #{tpu_custom_call.1} parent=31 // pred_check
          %p369 = pneg %p122
        $region38: #{tpu_custom_call.1} parent=31 // pred_check_branch
          %371 = sbr.rel (%p369) target = $region40
        $region39: #{tpu_custom_call.1} parent=31 // pred_region
          %373 = vsyncadd %s365, 0
          %s374 = sadd.s32 %s25, %s24
          %s375 = smul.addr %s374, 4
          %s376 = scalar_lea.hbm %s3, %s375
          %s378 = sshll.u32 %s368, 4
          %s379 = int_to_ptr.vmem [resolvable:$true] %s378
          %s380 = sshll.u32 %s376, 4
          %s381 = int_to_ptr.hbm [resolvable:$true] %s380
          %383 = dma.vmem_to_hbm [thread:$0]  %s379, 64, %s381, %s365
        $region40: #{tpu_custom_call.1} parent=31 // pred_fallthru
          _
      $region32: #{tpu_custom_call.1} parent=5 // pred_fallthru
        _
      %p384 = scmp.le.s32.totalorder 2, %s15
      // Predicated region
      $region41: #{tpu_custom_call.1} parent=5 // pred_check
        %p385 = pneg %p384
      $region42: #{tpu_custom_call.1} parent=5 // pred_check_branch
        %387 = sbr.rel (%p385) target = $region44
      $region43: #{tpu_custom_call.1} parent=5 // pred_region
        %s388 = ssub.s32 %s15, 2
        // Predicated region
        $region45: #{tpu_custom_call.1} parent=43 // pred_check
          %p389 = pneg %p128
        $region46: #{tpu_custom_call.1} parent=43 // pred_check_branch
          %391 = sbr.rel (%p389) target = $region48
        $region47: #{tpu_custom_call.1} parent=43 // pred_region
          %s392 = sand.u32 %s113, 1
          %s393 = scalar_lea.sflag [#allocation4], %s392
          %s394 = sand.u32 %s113, 1
          %s395 = smul.addr %s394, 4
          %s396 = scalar_lea.vmem [#allocation5], %s395
          %398 = dma.done %s393, 64
        $region48: #{tpu_custom_call.1} parent=43 // pred_fallthru
          _
      $region44: #{tpu_custom_call.1} parent=5 // pred_fallthru
        _
    $region6: #{tpu_custom_call.1} parent=1 // loop_footer
      %s19 = sadd.s32 1, %s15
    $region7: #{tpu_custom_call.1} parent=1 // loop_footer_branch
      %14 = sbr.rel target = $region3
    $region8: #{tpu_custom_call.1} parent=1 // loop_exit
      _
    %399 = vsyncpa [#allocation3], 1
    %s400 = scalar_lea.sflag [#allocation3], 1
    %401 = vsyncpa %s400, 1
    %402 = vsyncpa [#allocation4], 1
    %s403 = scalar_lea.sflag [#allocation4], 1
    %404 = vsyncpa %s403, 1

</llo_original>
